<compile_context>
chip_gen: v7x
topology: tpu7x:2x2x1
jax: 0.10.0
libtpu: 0.0.40
codegen_flags: <defaults>
</compile_context>

<pallas_src>
import functools

import jax
import jax.numpy as jnp
from jax.experimental import pallas as pl
from jax.experimental.pallas import tpu as pltpu

EPS = 1e-5
_LANE = 128
_SUBLANE = 8

_FUSED_SLAB_BYTES = 8 * 1024 * 1024    # max padded f32 slab for the fused path
_FUSED_VMEM_LIMIT = 48 * 1024 * 1024   # scoped VMEM for fused path (< v7x 64 MiB)
_STREAM_VMEM_LIMIT = 32 * 1024 * 1024  # scoped VMEM for streaming path
_MAX_TILE_BYTES = 2 * 1024 * 1024      # per-block f32 budget (double-buffered)
_MAX_TB = 4096                         # cap on batch-tile rows


def _round_up(v, m):
    return ((v + m - 1) // m) * m


# ---------------------------------------------------------------------------
# Fused single-block kernel (no grid): whole (B, C) slab resident in VMEM.
# Centered variance (matches PyTorch numerics closely, no cancellation).
# ---------------------------------------------------------------------------
def _fused_kernel(x_ref, gamma_ref, beta_ref, o_ref, *, batch, eps):
    x = jnp.maximum(x_ref[...].astype(jnp.float32), 0.0)            # (B, C)
    inv_b = 1.0 / batch
    mean = jnp.sum(x, axis=0, keepdims=True) * inv_b                 # (1, C)
    centered = x - mean
    var = jnp.sum(centered * centered, axis=0, keepdims=True) * inv_b
    inv_std = jax.lax.rsqrt(var + eps)
    scale = inv_std * gamma_ref[...]                                 # (1, C)
    shift = beta_ref[...] - mean * scale                             # (1, C)
    o_ref[...] = (x * scale + shift).astype(o_ref.dtype)


# ---------------------------------------------------------------------------
# Streaming pass 1: accumulate per-feature sum / sum^2 of relu(x) over batch
# tiles, finalize into scale/shift on the last step.  The tail tile is masked
# in-kernel (no materialized padding).  scale_ref/shift_ref are resident
# accumulators (same output block for every batch step).
# ---------------------------------------------------------------------------
def _stats_kernel(x_ref, gamma_ref, beta_ref, scale_ref, shift_ref, *,
                  batch, tb, eps):
    b = pl.program_id(1)

    @pl.when(b == 0)
    def _init():
        scale_ref[...] = jnp.zeros_like(scale_ref)
        shift_ref[...] = jnp.zeros_like(shift_ref)

    x = jnp.maximum(x_ref[...].astype(jnp.float32), 0.0)             # (tb, tc)
    row = jax.lax.broadcasted_iota(jnp.int32, x.shape, 0) + b * tb
    x = jnp.where(row < batch, x, 0.0)                               # mask tail rows
    scale_ref[...] += jnp.sum(x, axis=0, keepdims=True)              # running sum
    shift_ref[...] += jnp.sum(x * x, axis=0, keepdims=True)          # running sum^2

    @pl.when(b == pl.num_programs(1) - 1)
    def _finalize():
        inv_b = 1.0 / batch
        mean = scale_ref[...] * inv_b
        var = jnp.maximum(shift_ref[...] * inv_b - mean * mean, 0.0)
        inv_std = jax.lax.rsqrt(var + eps)
        scale = inv_std * gamma_ref[...]
        scale_ref[...] = scale
        shift_ref[...] = beta_ref[...] - mean * scale


# ---------------------------------------------------------------------------
# Streaming pass 2 (fully parallel): o = relu(x) * scale + shift.
# Out-of-bounds rows of the tail tile are never written back by Pallas.
# ---------------------------------------------------------------------------
def _normalize_kernel(x_ref, scale_ref, shift_ref, o_ref):
    x = jnp.maximum(x_ref[...].astype(jnp.float32), 0.0)
    o_ref[...] = (x * scale_ref[...] + shift_ref[...]).astype(o_ref.dtype)


def custom_act(x, gamma, beta, eps=EPS):
    """x: (B, C); gamma, beta: (C,). Returns relu(x) batch-normalized (training stats)."""
    B, C = x.shape
    gamma2 = gamma.reshape(1, C).astype(jnp.float32)
    beta2 = beta.reshape(1, C).astype(jnp.float32)

    # VMEM footprint of one f32 working slab (sublane/lane padded layout).
    slab_vmem_bytes = _round_up(B, _SUBLANE) * _round_up(C, _LANE) * 4

    if slab_vmem_bytes <= _FUSED_SLAB_BYTES:
        # ---- fused path: single kernel, x read exactly once, no grid ----
        return pl.pallas_call(
            functools.partial(_fused_kernel, batch=B, eps=eps),
            out_shape=jax.ShapeDtypeStruct((B, C), x.dtype),
            in_specs=[pl.BlockSpec(memory_space=pltpu.MemorySpace.VMEM)] * 3,
            out_specs=pl.BlockSpec(memory_space=pltpu.MemorySpace.VMEM),
            compiler_params=pltpu.CompilerParams(
                vmem_limit_bytes=_FUSED_VMEM_LIMIT),
        )(x, gamma2, beta2)

    # ---- streaming two-pass path over the original (B, C) layout ----
    # Feature-axis tiling only if even 8 rows of full C exceed the tile budget.
    if _round_up(C, _LANE) * _SUBLANE * 4 <= _MAX_TILE_BYTES:
        tc = C
    else:
        tc = max(_LANE, (_MAX_TILE_BYTES // (_SUBLANE * 4 * _LANE)) * _LANE)
    nc = pl.cdiv(C, tc)

    # Adaptive batch tile: big enough to amortize per-step overhead, small
    # enough to keep the double-buffered working set in scoped VMEM, 8-aligned,
    # and sized so padding waste on the tail tile is minimal.
    tc_lanes = _round_up(min(tc, C), _LANE)
    max_tb = max(_SUBLANE, (_MAX_TILE_BYTES // (4 * tc_lanes)) // _SUBLANE * _SUBLANE)
    target_tb = min(max_tb, _MAX_TB)
    nb = pl.cdiv(B, target_tb)
    tb = _round_up(pl.cdiv(B, nb), _SUBLANE)

    scale, shift = pl.pallas_call(
        functools.partial(_stats_kernel, batch=B, tb=tb, eps=eps),
        out_shape=(
            jax.ShapeDtypeStruct((1, C), jnp.float32),
            jax.ShapeDtypeStruct((1, C), jnp.float32),
        ),
        grid=(nc, nb),
        in_specs=[
            pl.BlockSpec((tb, tc), lambda c, b: (b, c)),
            pl.BlockSpec((1, tc), lambda c, b: (0, c)),
            pl.BlockSpec((1, tc), lambda c, b: (0, c)),
        ],
        out_specs=[
            pl.BlockSpec((1, tc), lambda c, b: (0, c)),
            pl.BlockSpec((1, tc), lambda c, b: (0, c)),
        ],
        compiler_params=pltpu.CompilerParams(
            dimension_semantics=("parallel", "arbitrary"),
            vmem_limit_bytes=_STREAM_VMEM_LIMIT),
    )(x, gamma2, beta2)

    return pl.pallas_call(
        _normalize_kernel,
        out_shape=jax.ShapeDtypeStruct((B, C), x.dtype),
        grid=(nc, nb),
        in_specs=[
            pl.BlockSpec((tb, tc), lambda c, b: (b, c)),
            pl.BlockSpec((1, tc), lambda c, b: (0, c)),
            pl.BlockSpec((1, tc), lambda c, b: (0, c)),
        ],
        out_specs=pl.BlockSpec((tb, tc), lambda c, b: (b, c)),
        compiler_params=pltpu.CompilerParams(
            dimension_semantics=("parallel", "parallel"),
            vmem_limit_bytes=_STREAM_VMEM_LIMIT),
    )(x, scale, shift)


def custom_act_ref(x, gamma, beta, eps=EPS):
    x = jnp.maximum(x, 0.0)
    mean = jnp.mean(x, axis=0, keepdims=True)
    var = jnp.mean((x - mean) ** 2, axis=0, keepdims=True)
    return (x - mean) * jax.lax.rsqrt(var + eps) * gamma[None, :] + beta[None, :]


if __name__ == "__main__":
    key = jax.random.PRNGKey(0)
    k1, k2 = jax.random.split(key)

    # Small case matching the module (BatchNorm1d(20)) -> fused single-pass path.
    B1, C1 = 8, 20
    x1 = jax.random.normal(k1, (B1, C1), dtype=jnp.float32)
    g1 = jnp.ones((C1,), dtype=jnp.float32)   # BatchNorm1d default weight
    b1 = jnp.zeros((C1,), dtype=jnp.float32)  # BatchNorm1d default bias
    y1 = jax.block_until_ready(custom_act(x1, g1, b1))
    r1 = custom_act_ref(x1, g1, b1)
    assert jnp.allclose(y1, r1, atol=1e-4, rtol=1e-4), "fused path mismatch vs reference"

    # Slab above the fused VMEM gate -> streaming two-pass path (exercises
    # adaptive tiling, accumulation, and in-kernel tail-row masking; no
    # wrapper-side transpose or padding copies).
    B2, C2 = 20008, 64
    x2 = jax.random.normal(k2, (B2, C2), dtype=jnp.float32) + 0.5
    g2 = jnp.ones((C2,), dtype=jnp.float32)
    b2 = jnp.zeros((C2,), dtype=jnp.float32)
    y2 = jax.block_until_ready(custom_act(x2, g2, b2))
    r2 = custom_act_ref(x2, g2, b2)
    assert jnp.allclose(y2, r2, atol=1e-4, rtol=1e-4), "streaming path mismatch vs reference"

    print("KERNEL_OK")
</pallas_src>

<mosaic_0001>
module attributes {stable_mosaic.version = 11 : i64} {
  func.func @_fused_kernel(%arg0: memref<8x20xf32, #tpu.memory_space<vmem>>, %arg1: memref<1x20xf32, #tpu.memory_space<vmem>>, %arg2: memref<1x20xf32, #tpu.memory_space<vmem>>, %arg3: memref<8x20xf32, #tpu.memory_space<vmem>>) attributes {dimension_semantics = [], scalar_prefetch = 0 : i64, scratch_operands = 0 : i64, tpu.core_type = #tpu.core_type<tc>} {
    %c0 = arith.constant 0 : index
    %c0_0 = arith.constant 0 : index
    %0 = vector.load %arg0[%c0, %c0_0] : memref<8x20xf32, #tpu.memory_space<vmem>>, vector<8x20xf32>
    %cst = arith.constant 0.000000e+00 : f32
    %1 = vector.broadcast %cst : f32 to vector<8x20xf32>
    %2 = arith.maximumf %0, %1 : vector<8x20xf32>
    %cst_1 = arith.constant dense<0.000000e+00> : vector<20xf32>
    %3 = vector.multi_reduction <add>, %2, %cst_1 [0] : vector<8x20xf32> to vector<20xf32>
    %4 = vector.shape_cast %3 : vector<20xf32> to vector<1x20xf32>
    %cst_2 = arith.constant 1.250000e-01 : f32
    %5 = vector.broadcast %cst_2 : f32 to vector<1x20xf32>
    %6 = arith.mulf %4, %5 : vector<1x20xf32>
    %7 = vector.broadcast %6 : vector<1x20xf32> to vector<8x20xf32>
    %8 = arith.subf %2, %7 : vector<8x20xf32>
    %9 = arith.mulf %8, %8 : vector<8x20xf32>
    %cst_3 = arith.constant dense<0.000000e+00> : vector<20xf32>
    %10 = vector.multi_reduction <add>, %9, %cst_3 [0] : vector<8x20xf32> to vector<20xf32>
    %11 = vector.shape_cast %10 : vector<20xf32> to vector<1x20xf32>
    %cst_4 = arith.constant 1.250000e-01 : f32
    %12 = vector.broadcast %cst_4 : f32 to vector<1x20xf32>
    %13 = arith.mulf %11, %12 : vector<1x20xf32>
    %cst_5 = arith.constant 9.99999974E-6 : f32
    %14 = vector.broadcast %cst_5 : f32 to vector<1x20xf32>
    %15 = arith.addf %13, %14 : vector<1x20xf32>
    %16 = math.rsqrt %15 : vector<1x20xf32>
    %c0_6 = arith.constant 0 : index
    %c0_7 = arith.constant 0 : index
    %17 = vector.load %arg1[%c0_6, %c0_7] : memref<1x20xf32, #tpu.memory_space<vmem>>, vector<1x20xf32>
    %18 = arith.mulf %16, %17 : vector<1x20xf32>
    %c0_8 = arith.constant 0 : index
    %c0_9 = arith.constant 0 : index
    %19 = vector.load %arg2[%c0_8, %c0_9] : memref<1x20xf32, #tpu.memory_space<vmem>>, vector<1x20xf32>
    %20 = arith.mulf %6, %18 : vector<1x20xf32>
    %21 = arith.subf %19, %20 : vector<1x20xf32>
    %22 = vector.broadcast %18 : vector<1x20xf32> to vector<8x20xf32>
    %23 = arith.mulf %2, %22 : vector<8x20xf32>
    %24 = vector.broadcast %21 : vector<1x20xf32> to vector<8x20xf32>
    %25 = arith.addf %23, %24 : vector<8x20xf32>
    %c0_10 = arith.constant 0 : index
    %c0_11 = arith.constant 0 : index
    %26 = vector.load %arg3[%c0_10, %c0_11] : memref<8x20xf32, #tpu.memory_space<vmem>>, vector<8x20xf32>
    tpu.vector_store %arg3[%c0_10, %c0_11], %25 {strides = array<i32>} : memref<8x20xf32, #tpu.memory_space<vmem>>, vector<8x20xf32>,
    return
  }
}

</mosaic_0001>

<llo_original>
// kernel: tpu_custom_call.1
$region0: #{tpu_custom_call.1}
  #allocation0 [shape = 'u32[]', space=smem, size = 0x4, offset = 0x4, fixed_abs, tag = 'smem constant byte address 0x4 - core index']
  #allocation1 [shape = 'u32[144,128]{1,0:T(1,128)}', space=vmem, size = 0x12000, scoped, tag = 'internal scratch']
  %s0 = inlined_call_operand.hbm [shape: f32[8,20], index: 0, kind: input, shape index: {}]
  %s1 = inlined_call_operand.vmem [shape: f32[1,20], index: 1, kind: input, shape index: {}]
  %s2 = inlined_call_operand.vmem [shape: f32[1,20], index: 2, kind: input, shape index: {}]
  %s3 = inlined_call_operand.hbm [shape: f32[8,20], index: 3, kind: output, shape index: {}]
  %s4 = sld [smem:[#allocation0]]
  $region26: #{tpu_custom_call.1} parent=0
    _
  %s6 = ssub.s32 1, %s4
  %s7 = scalar_select 0, %s6, %s4
  $region1: #{tpu_custom_call.1} parent=0
    #allocation2 [shape = 'u8[4096]{0}', space=vmem, size = 0x1000, scoped, tag = 'input window, operand 0, single buffered']
    #allocation3 [shape = 's32[1]{0}', space=sflag, size = 0x4, scoped, tag = 'scoped memory for tpu_custom_call.1']
    #allocation4 [shape = 's32[1]{0}', space=sflag, size = 0x4, scoped, tag = 'scoped memory for tpu_custom_call.1']
    #allocation5 [shape = 'u8[4096]{0}', space=vmem, size = 0x1000, scoped, tag = 'output window, operand 0, single buffered']
    %8 = vsyncpa [#allocation3], 0
    %9 = vsyncpa [#allocation4], 0
    // Predicated region
    $region2: #{tpu_custom_call.1} parent=1 // pred_check
      _
    $region3: #{tpu_custom_call.1} parent=1 // pred_check_branch
      %11 = sbr.rel (0) target = $region5
    $region4: #{tpu_custom_call.1} parent=1 // pred_region
      %s13 = ssub.s32 128, 128
      %14 = vsyncadd [#allocation3], %s13
      %s16 = sshll.u32 [#allocation2], 4
      %s17 = int_to_ptr.vmem [resolvable:$true] %s16
      %19 = dma.hbm_to_vmem [thread:$0]  %s0, 128, %s17, [#allocation3]
    $region5: #{tpu_custom_call.1} parent=1 // pred_fallthru
      _
    // Predicated region
    $region6: #{tpu_custom_call.1} parent=1 // pred_check
      _
    $region7: #{tpu_custom_call.1} parent=1 // pred_check_branch
      %21 = sbr.rel (0) target = $region9
    $region8: #{tpu_custom_call.1} parent=1 // pred_region
      _
    $region9: #{tpu_custom_call.1} parent=1 // pred_fallthru
      _
    // Predicated region
    $region10: #{tpu_custom_call.1} parent=1 // pred_check
      _
    $region11: #{tpu_custom_call.1} parent=1 // pred_check_branch
      %23 = sbr.rel (0) target = $region13
    $region12: #{tpu_custom_call.1} parent=1 // pred_region
      _
    $region13: #{tpu_custom_call.1} parent=1 // pred_fallthru
      _
    // Predicated region
    $region14: #{tpu_custom_call.1} parent=1 // pred_check
      _
    $region15: #{tpu_custom_call.1} parent=1 // pred_check_branch
      %25 = sbr.rel (0) target = $region17
    $region16: #{tpu_custom_call.1} parent=1 // pred_region
      %26 = dma.done [#allocation3], 128
    $region17: #{tpu_custom_call.1} parent=1 // pred_fallthru
      _
    %v27 = vld [vmem:[#allocation2] sm:$0xff]
    %v28 = vmax.f32 %v27, 0.0
    %vm29 = vcmask 162816
    %v30 = vsel %vm29, %v28, 0.0
    %v31 = vrot.slane %v30, 4
    %v32 = vadd.f32 %v30, %v31
    %v33 = vrot.slane %v32, 2
    %v34 = vadd.f32 %v32, %v33
    %v35 = vrot.slane %v34, 1
    %v36 = vadd.f32 %v34, %v35
    %v37 = vmul.f32 %v36, 0.125
    %v38 = vsub.f32 %v28, %v37
    %v39 = vmul.f32 %v38, %v38
    %v40 = vsel %vm29, %v39, 0.0
    %v41 = vrot.slane %v40, 4
    %v42 = vadd.f32 %v40, %v41
    %v43 = vrot.slane %v42, 2
    %v44 = vadd.f32 %v42, %v43
    %v45 = vrot.slane %v44, 1
    %v46 = vadd.f32 %v44, %v45
    %v47 = vmul.f32 %v46, 0.125
    %v48 = vadd.f32 %v47, 1e-05
    %v49 = vrsqrt.pop %v48
    %v50 = vld [vmem:[%s1] sm:$0x1]
    %v51 = vmul.f32 %v49, %v50
    %v52 = vld [vmem:[%s2] sm:$0x1]
    %v53 = vmul.f32 %v37, %v51
    %v54 = vsub.f32 %v52, %v53
    %v55 = vlaneseq
    %v56 = vshrl.u32 %v55, 7
    %v57 = vsub.s32 0, %v56
    %v58 = vrot.slane %v51, %v57
    %v59 = vmul.f32 %v28, %v58
    %v61 = vlaneseq
    %v62 = vshrl.u32 %v61, 7
    %v63 = vsub.s32 0, %v62
    %v64 = vrot.slane %v54, %v63
    %v66 = vadd.f32 %v59, %v64
    %67 = vst.msk [vmem:[#allocation5] sm:$0xff] %vm29, %v66
    // Predicated region
    $region18: #{tpu_custom_call.1} parent=1 // pred_check
      _
    $region19: #{tpu_custom_call.1} parent=1 // pred_check_branch
      %69 = sbr.rel (0) target = $region21
    $region20: #{tpu_custom_call.1} parent=1 // pred_region
      %s71 = ssub.s32 128, 128
      %72 = vsyncadd [#allocation4], %s71
      %s74 = sshll.u32 [#allocation5], 4
      %s75 = int_to_ptr.vmem [resolvable:$true] %s74
      %77 = dma.vmem_to_hbm [thread:$0]  %s75, 128, %s3, [#allocation4]
    $region21: #{tpu_custom_call.1} parent=1 // pred_fallthru
      _
    // Predicated region
    $region22: #{tpu_custom_call.1} parent=1 // pred_check
      _
    $region23: #{tpu_custom_call.1} parent=1 // pred_check_branch
      %79 = sbr.rel (0) target = $region25
    $region24: #{tpu_custom_call.1} parent=1 // pred_region
      %80 = dma.done [#allocation4], 128
    $region25: #{tpu_custom_call.1} parent=1 // pred_fallthru
      _
    %81 = vsyncpa [#allocation3], 1
    %82 = vsyncpa [#allocation4], 1

</llo_original>
